<compile_context>
chip_gen: v5e
topology: v5e:2x2
jax: 0.10.0
libtpu: 0.0.40
codegen_flags: <defaults>
</compile_context>

<pallas_src>
import functools

import jax
import jax.numpy as jnp
from jax.experimental import pallas as pl
from jax.experimental.pallas import tpu as pltpu


def _round_up(a, b):
    return ((a + b - 1) // b) * b


def _channel_gate_kernel(x_ref, w1_ref, b1_ref, w2_ref, b2_ref, o_ref):
    # x: (tm, C) native dtype   w1: (C, H) native dtype   b1: (1, H) f32
    # w2: (H, C) native dtype   b2: (1, C) f32            o: (tm, C) native dtype
    x = x_ref[...]
    h = jnp.dot(x, w1_ref[...], preferred_element_type=jnp.float32) + b1_ref[...]
    h = jnp.maximum(h, 0.0)                                       # ReLU (VPU)
    w2 = w2_ref[...]
    att = jnp.dot(h.astype(w2.dtype), w2,
                  preferred_element_type=jnp.float32) + b2_ref[...]
    # sigmoid(att) = 1 / (1 + exp(-att)); exp + approx reciprocal both on EUP.
    scale = pl.reciprocal(1.0 + jnp.exp(-att), approx=True)
    o_ref[...] = (x.astype(jnp.float32) * scale).astype(o_ref.dtype)


def channel_gate(x, w1, b1, w2, b2, *, block_rows=8192):
    """x: (..., C); w1: (C, H); b1: (H,); w2: (H, C); b2: (C,).

    Returns an array with x's shape and dtype (f32 accumulation inside).
    """
    *lead, C = x.shape
    H = w1.shape[1]
    M = 1
    for d in lead:
        M *= d
    xf = x.reshape(M, C)  # collapse of contiguous leading dims: no HBM copy

    # Row tile: multiple of 8 sublanes, >=512 rows when available, aim for ~8
    # grid steps (keeps both v7x TensorCores busy), capped by block_rows and M.
    tm = min(block_rows, max(512, _round_up(pl.cdiv(M, 8), 8)))
    tm = min(tm, _round_up(M, 8))
    grid = (pl.cdiv(M, tm),)

    out = pl.pallas_call(
        _channel_gate_kernel,
        out_shape=jax.ShapeDtypeStruct((M, C), x.dtype),
        grid=grid,
        in_specs=[
            pl.BlockSpec((tm, C), lambda i: (i, 0)),   # activations, row-tiled
            pl.BlockSpec((C, H), lambda i: (0, 0)),    # W1 (broadcast block)
            pl.BlockSpec((1, H), lambda i: (0, 0)),    # b1
            pl.BlockSpec((H, C), lambda i: (0, 0)),    # W2
            pl.BlockSpec((1, C), lambda i: (0, 0)),    # b2
        ],
        out_specs=pl.BlockSpec((tm, C), lambda i: (i, 0)),
        compiler_params=pltpu.CompilerParams(
            dimension_semantics=("parallel",),          # independent row tiles
            vmem_limit_bytes=48 << 20,                  # fits 8k-row f32 tiles everywhere
        ),
        cost_estimate=pl.CostEstimate(
            flops=4 * M * C * H + 4 * M * C,
            transcendentals=M * C,
            bytes_accessed=2 * M * C * x.dtype.itemsize
            + 2 * C * H * w1.dtype.itemsize
            + (C + H) * 4,
        ),
    )(
        xf,
        w1,
        b1.reshape(1, H).astype(jnp.float32),
        w2,
        b2.reshape(1, C).astype(jnp.float32),
    )
    return out.reshape(*lead, C)


def channel_gate_ref(x, w1, b1, w2, b2):
    h = jnp.maximum(x @ w1 + b1, 0.0)
    att = h @ w2 + b2
    return x * jax.nn.sigmoid(att)


if __name__ == "__main__":
    key = jax.random.PRNGKey(0)
    k_x, k_w1, k_b1, k_w2, k_b2 = jax.random.split(key, 5)

    # gate_channels=128, reduction_ratio=16 -> hidden=8; x: (batch, seq, channels).
    B, S, C, R = 2, 16, 128, 16
    H = C // R

    x = jax.random.normal(k_x, (B, S, C), jnp.float32)
    # PyTorch nn.Linear(C, H) stores weight as (H, C) and computes x @ W.T;
    # we pass the (C, H) / (H, C) layouts directly.
    w1 = jax.random.normal(k_w1, (C, H), jnp.float32) / jnp.sqrt(float(C))
    b1 = 0.1 * jax.random.normal(k_b1, (H,), jnp.float32)
    w2 = jax.random.normal(k_w2, (H, C), jnp.float32) / jnp.sqrt(float(H))
    b2 = 0.1 * jax.random.normal(k_b2, (C,), jnp.float32)

    fwd = jax.jit(functools.partial(channel_gate))
    out = fwd(x, w1, b1, w2, b2)
    jax.block_until_ready(out)

    ref = channel_gate_ref(x, w1, b1, w2, b2)
    assert out.shape == x.shape and out.dtype == x.dtype
    assert bool(jnp.all(jnp.isfinite(out)))
    assert bool(jnp.allclose(out, ref, rtol=2e-2, atol=2e-2))

    # Exercise the ragged-grid (masked last block) + bf16-I/O path.
    xr = jax.random.normal(jax.random.PRNGKey(1), (3, 17, C), jnp.bfloat16)
    out_bf = jax.block_until_ready(
        channel_gate(xr, w1.astype(jnp.bfloat16), b1, w2.astype(jnp.bfloat16), b2))
    ref_bf = channel_gate_ref(xr.astype(jnp.float32), w1, b1, w2, b2)
    assert out_bf.shape == xr.shape and out_bf.dtype == jnp.bfloat16
    assert bool(jnp.all(jnp.isfinite(out_bf.astype(jnp.float32))))
    assert bool(jnp.allclose(out_bf.astype(jnp.float32), ref_bf, rtol=1e-1, atol=1e-1))

    print("KERNEL_OK")
</pallas_src>

<mosaic_0001>
module attributes {stable_mosaic.version = 11 : i64} {
  func.func @_channel_gate_kernel(%arg0: i32, %arg1: memref<32x128xf32, #tpu.memory_space<vmem>>, %arg2: memref<128x8xf32, #tpu.memory_space<vmem>>, %arg3: memref<1x8xf32, #tpu.memory_space<vmem>>, %arg4: memref<8x128xf32, #tpu.memory_space<vmem>>, %arg5: memref<1x128xf32, #tpu.memory_space<vmem>>, %arg6: memref<32x128xf32, #tpu.memory_space<vmem>>) attributes {dimension_semantics = [#tpu.dimension_semantics<parallel>], iteration_bounds = array<i64: 1>, scalar_prefetch = 0 : i64, scratch_operands = 0 : i64, tpu.core_type = #tpu.core_type<tc>, window_params = [{transform_indices = @transform_0, window_bounds = array<i64: 32, 128>}, {pipeline_mode = #tpu.pipeline_mode<synchronous>, transform_indices = @transform_1, window_bounds = array<i64: 128, 8>}, {pipeline_mode = #tpu.pipeline_mode<synchronous>, transform_indices = @transform_2, window_bounds = array<i64: 1, 8>}, {pipeline_mode = #tpu.pipeline_mode<synchronous>, transform_indices = @transform_3, window_bounds = array<i64: 8, 128>}, {pipeline_mode = #tpu.pipeline_mode<synchronous>, transform_indices = @transform_4, window_bounds = array<i64: 1, 128>}, {transform_indices = @transform_5, window_bounds = array<i64: 32, 128>}]} {
    %c0 = arith.constant 0 : index
    %c0_0 = arith.constant 0 : index
    %0 = vector.load %arg1[%c0, %c0_0] : memref<32x128xf32, #tpu.memory_space<vmem>>, vector<32x128xf32>
    %c0_1 = arith.constant 0 : index
    %c0_2 = arith.constant 0 : index
    %1 = vector.load %arg2[%c0_1, %c0_2] : memref<128x8xf32, #tpu.memory_space<vmem>>, vector<128x8xf32>
    %cst = arith.constant dense<0.000000e+00> : vector<32x8xf32>
    %2 = tpu.matmul %0, %1, %cst {dimension_numbers = #tpu.dot_dimension_numbers<[1], [0], [0], [1], [0, 0, 1, 1], [], []>} : vector<32x128xf32>, vector<128x8xf32>, vector<32x8xf32> -> vector<32x8xf32>
    %c0_3 = arith.constant 0 : index
    %c0_4 = arith.constant 0 : index
    %3 = vector.load %arg3[%c0_3, %c0_4] : memref<1x8xf32, #tpu.memory_space<vmem>>, vector<1x8xf32>
    %4 = vector.broadcast %3 : vector<1x8xf32> to vector<32x8xf32>
    %5 = arith.addf %2, %4 : vector<32x8xf32>
    %cst_5 = arith.constant 0.000000e+00 : f32
    %6 = vector.broadcast %cst_5 : f32 to vector<32x8xf32>
    %7 = arith.maximumf %5, %6 : vector<32x8xf32>
    %c0_6 = arith.constant 0 : index
    %c0_7 = arith.constant 0 : index
    %8 = vector.load %arg4[%c0_6, %c0_7] : memref<8x128xf32, #tpu.memory_space<vmem>>, vector<8x128xf32>
    %cst_8 = arith.constant dense<0.000000e+00> : vector<32x128xf32>
    %9 = tpu.matmul %7, %8, %cst_8 {dimension_numbers = #tpu.dot_dimension_numbers<[1], [0], [0], [1], [0, 0, 1, 1], [], []>} : vector<32x8xf32>, vector<8x128xf32>, vector<32x128xf32> -> vector<32x128xf32>
    %c0_9 = arith.constant 0 : index
    %c0_10 = arith.constant 0 : index
    %10 = vector.load %arg5[%c0_9, %c0_10] : memref<1x128xf32, #tpu.memory_space<vmem>>, vector<1x128xf32>
    %11 = vector.broadcast %10 : vector<1x128xf32> to vector<32x128xf32>
    %12 = arith.addf %9, %11 : vector<32x128xf32>
    %cst_11 = arith.constant 0.000000e+00 : f32
    %13 = vector.broadcast %cst_11 : f32 to vector<32x128xf32>
    %14 = arith.subf %13, %12 : vector<32x128xf32>
    %15 = math.exp %14 : vector<32x128xf32>
    %cst_12 = arith.constant 1.000000e+00 : f32
    %16 = vector.broadcast %cst_12 : f32 to vector<32x128xf32>
    %17 = arith.addf %16, %15 : vector<32x128xf32>
    %18 = tpu.reciprocal %17 {approx = true} : vector<32x128xf32> -> vector<32x128xf32>
    %19 = arith.mulf %0, %18 : vector<32x128xf32>
    %c0_13 = arith.constant 0 : index
    %c0_14 = arith.constant 0 : index
    %20 = vector.load %arg6[%c0_13, %c0_14] : memref<32x128xf32, #tpu.memory_space<vmem>>, vector<32x128xf32>
    tpu.vector_store %arg6[%c0_13, %c0_14], %19 {strides = array<i32>} : memref<32x128xf32, #tpu.memory_space<vmem>>, vector<32x128xf32>,
    return
  }
  func.func @transform_0(%arg0: i32) -> (i32, i32) {
    %c0_i32 = arith.constant 0 : i32
    %c0_i32_0 = arith.constant 0 : i32
    return %arg0, %c0_i32 : i32, i32
  }
  func.func @transform_1(%arg0: i32) -> (i32, i32) {
    %c0_i32 = arith.constant 0 : i32
    %c0_i32_0 = arith.constant 0 : i32
    %c0_i32_1 = arith.constant 0 : i32
    return %c0_i32, %c0_i32_0 : i32, i32
  }
  func.func @transform_2(%arg0: i32) -> (i32, i32) {
    %c0_i32 = arith.constant 0 : i32
    %c0_i32_0 = arith.constant 0 : i32
    %c0_i32_1 = arith.constant 0 : i32
    return %c0_i32, %c0_i32_0 : i32, i32
  }
  func.func @transform_3(%arg0: i32) -> (i32, i32) {
    %c0_i32 = arith.constant 0 : i32
    %c0_i32_0 = arith.constant 0 : i32
    %c0_i32_1 = arith.constant 0 : i32
    return %c0_i32, %c0_i32_0 : i32, i32
  }
  func.func @transform_4(%arg0: i32) -> (i32, i32) {
    %c0_i32 = arith.constant 0 : i32
    %c0_i32_0 = arith.constant 0 : i32
    %c0_i32_1 = arith.constant 0 : i32
    return %c0_i32, %c0_i32_0 : i32, i32
  }
  func.func @transform_5(%arg0: i32) -> (i32, i32) {
    %c0_i32 = arith.constant 0 : i32
    %c0_i32_0 = arith.constant 0 : i32
    return %arg0, %c0_i32 : i32, i32
  }
}

</mosaic_0001>

<llo_original>
// kernel: channel_gate.1
$region0: #{channel_gate.1}
  #allocation0 [shape = 'u32[]', space=smem, size = 0x4, offset = 0x4, fixed_abs, tag = 'smem constant byte address 0x4 - core index']
  #allocation1 [shape = 'u32[72,128]{1,0:T(1,128)}', space=vmem, size = 0x9000, scoped, tag = 'internal scratch']
  %s0 = inlined_call_operand.vmem [shape: f32[32,128], index: 0, kind: input, shape index: {}]
  %s1 = inlined_call_operand.vmem [shape: f32[128,8], index: 1, kind: input, shape index: {}]
  %s2 = inlined_call_operand.vmem [shape: f32[1,8], index: 2, kind: input, shape index: {}]
  %s3 = inlined_call_operand.vmem [shape: f32[8,128], index: 3, kind: input, shape index: {}]
  %s4 = inlined_call_operand.vmem [shape: f32[1,128], index: 4, kind: input, shape index: {}]
  %s5 = inlined_call_operand.hbm [shape: f32[32,128], index: 5, kind: output, shape index: {}]
  %s6 = sld [smem:[#allocation0]]
  $region30: #{channel_gate.1} parent=0
    _
  %s8 = ssub.s32 1, %s6
  %s9 = scalar_select 0, %s8, %s6
  $region1: #{channel_gate.1} parent=0
    #allocation2 [shape = 'u8[16384]{0}', space=vmem, size = 0x4000, scoped, tag = 'output window, operand 0, single buffered']
    #allocation3 [shape = 's32[1]{0}', space=sflag, size = 0x4, scoped, tag = 'scoped memory for channel_gate.1']
    %10 = vsyncpa [#allocation3], 0
    // Predicated region
    $region2: #{channel_gate.1} parent=1 // pred_check
      _
    $region3: #{channel_gate.1} parent=1 // pred_check_branch
      %12 = sbr.rel (0) target = $region5
    $region4: #{channel_gate.1} parent=1 // pred_region
      _
    $region5: #{channel_gate.1} parent=1 // pred_fallthru
      _
    // Predicated region
    $region6: #{channel_gate.1} parent=1 // pred_check
      _
    $region7: #{channel_gate.1} parent=1 // pred_check_branch
      %14 = sbr.rel (0) target = $region9
    $region8: #{channel_gate.1} parent=1 // pred_region
      _
    $region9: #{channel_gate.1} parent=1 // pred_fallthru
      _
    // Predicated region
    $region10: #{channel_gate.1} parent=1 // pred_check
      _
    $region11: #{channel_gate.1} parent=1 // pred_check_branch
      %16 = sbr.rel (0) target = $region13
    $region12: #{channel_gate.1} parent=1 // pred_region
      _
    $region13: #{channel_gate.1} parent=1 // pred_fallthru
      _
    // Predicated region
    $region14: #{channel_gate.1} parent=1 // pred_check
      _
    $region15: #{channel_gate.1} parent=1 // pred_check_branch
      %18 = sbr.rel (0) target = $region17
    $region16: #{channel_gate.1} parent=1 // pred_region
      _
    $region17: #{channel_gate.1} parent=1 // pred_fallthru
      _
    // Predicated region
    $region18: #{channel_gate.1} parent=1 // pred_check
      _
    $region19: #{channel_gate.1} parent=1 // pred_check_branch
      %20 = sbr.rel (0) target = $region21
    $region20: #{channel_gate.1} parent=1 // pred_region
      _
    $region21: #{channel_gate.1} parent=1 // pred_fallthru
      _
    %v21 = vld [vmem:[%s0] sm:$0xff]
    %v22 = vld [vmem:[%s0 + $0x8] sm:$0xff]
    %v23 = vld [vmem:[%s0 + $0x10] sm:$0xff]
    %v24 = vld [vmem:[%s0 + $0x18] sm:$0xff]
    %v25 = vld [vmem:[%s1] sm:$0xff]
    %v26 = vld [vmem:[%s1 + $0x8] sm:$0xff]
    %v27 = vld [vmem:[%s1 + $0x10] sm:$0xff]
    %v28 = vld [vmem:[%s1 + $0x18] sm:$0xff]
    %v29 = vld [vmem:[%s1 + $0x20] sm:$0xff]
    %v30 = vld [vmem:[%s1 + $0x28] sm:$0xff]
    %v31 = vld [vmem:[%s1 + $0x30] sm:$0xff]
    %v32 = vld [vmem:[%s1 + $0x38] sm:$0xff]
    %v33 = vld [vmem:[%s1 + $0x40] sm:$0xff]
    %v34 = vld [vmem:[%s1 + $0x48] sm:$0xff]
    %v35 = vld [vmem:[%s1 + $0x50] sm:$0xff]
    %v36 = vld [vmem:[%s1 + $0x58] sm:$0xff]
    %v37 = vld [vmem:[%s1 + $0x60] sm:$0xff]
    %v38 = vld [vmem:[%s1 + $0x68] sm:$0xff]
    %v39 = vld [vmem:[%s1 + $0x70] sm:$0xff]
    %v40 = vld [vmem:[%s1 + $0x78] sm:$0xff]
    %v41 = vld [vmem:[%s2] sm:$0x1]
    %v43 = vperm.slane %v41, 0
    %45 = vmatpush.msra.mxu0 %v40
    %46 = vmatpush.msra.mxu0 %v39
    %47 = vmatpush.msra.mxu0 %v38
    %48 = vmatpush.msra.mxu0 %v37
    %49 = vmatpush.msra.mxu0 %v36
    %50 = vmatpush.msra.mxu0 %v35
    %51 = vmatpush.msra.mxu0 %v34
    %52 = vmatpush.msra.mxu0 %v33
    %53 = vmatpush.msra.mxu0 %v32
    %54 = vmatpush.msra.mxu0 %v31
    %55 = vmatpush.msra.mxu0 %v30
    %56 = vmatpush.msra.mxu0 %v29
    %57 = vmatpush.msra.mxu0 %v28
    %58 = vmatpush.msra.mxu0 %v27
    %59 = vmatpush.msra.mxu0 %v26
    %60 = vmatpush.msra.mxu0 %v25
    %61 = vmatmul.f32.gmra.mxu0 %v21
    %v62 = vpop.f32.mrf.mxu0
    %v63 = vadd.f32 %v43, %v62
    %64 = vmatmul.f32.gmra.mxu0 %v22
    %v65 = vpop.f32.mrf.mxu0
    %v66 = vadd.f32 %v43, %v65
    %67 = vmatmul.f32.gmra.mxu0 %v23
    %v68 = vpop.f32.mrf.mxu0
    %v69 = vadd.f32 %v43, %v68
    %70 = vmatmul.f32.gmra.mxu0 %v24
    %v71 = vpop.f32.mrf.mxu0
    %v72 = vadd.f32 %v43, %v71
    %73 = vdwg.mxu0
    %v74 = vmax.f32 %v63, 0.0
    %v75 = vmax.f32 %v66, 0.0
    %v76 = vmax.f32 %v69, 0.0
    %v77 = vmax.f32 %v72, 0.0
    %v78 = vld [vmem:[%s3] sm:$0xff]
    %v79 = vld [vmem:[%s4] sm:$0x1]
    %v81 = vperm.slane %v79, 0
    %vm83 = vcmask 64512
    %v85 = vsel %vm83, %v74, 0
    %v88 = vsel %vm83, %v75, 0
    %v91 = vsel %vm83, %v76, 0
    %v94 = vsel %vm83, %v77, 0
    %96 = vmatpush.msra.mxu0 0.0
    %97 = vmatpush.msra.mxu0 0.0
    %98 = vmatpush.msra.mxu0 0.0
    %99 = vmatpush.msra.mxu0 0.0
    %100 = vmatpush.msra.mxu0 0.0
    %101 = vmatpush.msra.mxu0 0.0
    %102 = vmatpush.msra.mxu0 0.0
    %103 = vmatpush.msra.mxu0 0.0
    %104 = vmatpush.msra.mxu0 0.0
    %105 = vmatpush.msra.mxu0 0.0
    %106 = vmatpush.msra.mxu0 0.0
    %107 = vmatpush.msra.mxu0 0.0
    %108 = vmatpush.msra.mxu0 0.0
    %109 = vmatpush.msra.mxu0 0.0
    %110 = vmatpush.msra.mxu0 0.0
    %111 = vmatpush.msra.mxu0 %v78
    %112 = vmatmul.f32.gmra.mxu0 %v85
    %v113 = vpop.f32.mrf.mxu0
    %v114 = vadd.f32 %v81, %v113
    %115 = vmatmul.f32.gmra.mxu0 %v88
    %v116 = vpop.f32.mrf.mxu0
    %v117 = vadd.f32 %v81, %v116
    %118 = vmatmul.f32.gmra.mxu0 %v91
    %v119 = vpop.f32.mrf.mxu0
    %v120 = vadd.f32 %v81, %v119
    %121 = vmatmul.f32.gmra.mxu0 %v94
    %v122 = vpop.f32.mrf.mxu0
    %v123 = vadd.f32 %v81, %v122
    %124 = vdwg.mxu0
    %v125 = vsub.f32 0.0, %v114
    %v126 = vsub.f32 0.0, %v117
    %v127 = vsub.f32 0.0, %v120
    %v128 = vsub.f32 0.0, %v123
    %v129 = vmul.f32 %v125, 1.442695
    %v130 = vpow.pop %v129
    %v131 = vmul.f32 %v126, 1.442695
    %v132 = vpow.pop %v131
    %v133 = vmul.f32 %v127, 1.442695
    %v134 = vpow.pop %v133
    %v135 = vmul.f32 %v128, 1.442695
    %v136 = vpow.pop %v135
    %v137 = vadd.f32 %v130, 1.0
    %v138 = vadd.f32 %v132, 1.0
    %v139 = vadd.f32 %v134, 1.0
    %v140 = vadd.f32 %v136, 1.0
    %v141 = vrcp.pop %v137
    %v142 = vrcp.pop %v138
    %v143 = vrcp.pop %v139
    %v144 = vrcp.pop %v140
    %v145 = vmul.f32 %v21, %v141
    %v146 = vmul.f32 %v22, %v142
    %v147 = vmul.f32 %v23, %v143
    %v148 = vmul.f32 %v24, %v144
    %149 = vst [vmem:[#allocation2] sm:$0xff] %v145
    %150 = vst [vmem:[#allocation2 + $0x8] sm:$0xff] %v146
    %151 = vst [vmem:[#allocation2 + $0x10] sm:$0xff] %v147
    %152 = vst [vmem:[#allocation2 + $0x18] sm:$0xff] %v148
    // Predicated region
    $region22: #{channel_gate.1} parent=1 // pred_check
      _
    $region23: #{channel_gate.1} parent=1 // pred_check_branch
      %154 = sbr.rel (0) target = $region25
    $region24: #{channel_gate.1} parent=1 // pred_region
      %156 = vsyncadd [#allocation3], 0
      %s157 = sshll.u32 [#allocation2], 4
      %s158 = int_to_ptr.vmem [resolvable:$true] %s157
      %s159 = sshll.u32 %s5, 4
      %s160 = int_to_ptr.hbm [resolvable:$true] %s159
      %165 = dma.vmem_to_hbm [thread:$0]  %s158, 512, %s160, [#allocation3], 128, 128, 8
    $region25: #{channel_gate.1} parent=1 // pred_fallthru
      _
    // Predicated region
    $region26: #{channel_gate.1} parent=1 // pred_check
      _
    $region27: #{channel_gate.1} parent=1 // pred_check_branch
      %167 = sbr.rel (0) target = $region29
    $region28: #{channel_gate.1} parent=1 // pred_region
      %169 = dma.done [#allocation3], 512
    $region29: #{channel_gate.1} parent=1 // pred_fallthru
      _
    %170 = vsyncpa [#allocation3], 1

</llo_original>
